<compile_context>
chip_gen: v7x
topology: tpu7x:2x2x1
jax: 0.10.0
libtpu: 0.0.40
codegen_flags: <defaults>
</compile_context>

<pallas_src>
import functools

import jax
import jax.numpy as jnp
from jax.experimental import pallas as pl
from jax.experimental.pallas import tpu as pltpu


def _write_mask_kernel(idx_ref, x_hbm_ref, o_ref, *, mask_value):
    # idx_ref:   SMEM scalar-prefetch (P,) channel indices; consumed by the
    #            output BlockSpec index_map, unused in the body.
    # x_hbm_ref: raw HBM ref of x (memory_space=pl.ANY), aliased to the output;
    #            never read -> untouched channels keep their original data.
    # o_ref:     (N, 1, sub, lane) VMEM block = one selected channel across the
    #            whole batch.  Pure constant fill; no loads at all.
    del idx_ref, x_hbm_ref
    o_ref[...] = jnp.full(o_ref.shape, mask_value, o_ref.dtype)


def _mask_selected_channels(x, padded_idx, mask_value):
    """Overwrite channels `padded_idx` of NCHW x (all batch rows) with mask_value.

    `padded_idx` has static length P; duplicate entries are fine (idempotent
    rewrite) — that is how slots past `selected_num` are padded.
    """
    N, C, H, W = x.shape
    P = padded_idx.shape[0]
    HW = H * W

    # Lane-dense regroup of the spatial dims when possible (unmasked 128-wide
    # stores); otherwise keep (H, W) — a full-extent last-two-dims block is
    # always legal regardless of H, W.
    if HW % 128 == 0:
        sub, lane = HW // 128, 128
    else:
        sub, lane = H, W
    xs = x.reshape(N, C, sub, lane)

    out = pl.pallas_call(
        functools.partial(_write_mask_kernel, mask_value=float(mask_value)),
        out_shape=jax.ShapeDtypeStruct((N, C, sub, lane), x.dtype),
        grid_spec=pltpu.PrefetchScalarGridSpec(
            num_scalar_prefetch=1,
            grid=(P,),                                      # one step / selected channel
            in_specs=[pl.BlockSpec(memory_space=pl.ANY)],   # x stays in HBM, no read DMA
            out_specs=pl.BlockSpec(
                (N, 1, sub, lane),                          # whole batch of one channel
                lambda s, idx_ref: (0, idx_ref[s], 0, 0),
            ),
        ),
        # Flat args are (padded_idx, xs) -> xs is input index 1; alias it to
        # output 0 so unselected channels keep their original contents and no
        # second full-tensor buffer is written by the kernel.
        input_output_aliases={1: 0},
        compiler_params=pltpu.CompilerParams(
            # Data-dependent (possibly duplicated) output block index -> must be
            # "arbitrary".  Single tiny axis, so megacore sharding is moot.
            dimension_semantics=("arbitrary",),
        ),
    )(padded_idx, xs)

    return out.reshape(N, C, H, W)


@functools.partial(jax.jit, static_argnames=("gaussian_mask_param", "mask_value"))
def gaussian_index_masking(x, key, gaussian_mask_param, mask_value=0.0):
    """JAX/Pallas equivalent of GaussianIndexMasking.forward (fully jittable)."""
    N, C, H, W = x.shape
    P = int(gaussian_mask_param)
    k_num, k_perm = jax.random.split(key)

    # selected_num = torch.randint(gaussian_mask_param, size=(1,))  -> [0, P)
    # Kept as a traced scalar (no host sync).
    selected_num = jax.random.randint(k_num, (), 0, P, dtype=jnp.int32)
    # selected = torch.randperm(C)[:selected_num]
    perm = jax.random.permutation(k_perm, C).astype(jnp.int32)

    # Pad the index list to static length P: slots past selected_num are
    # clamped to the last *selected* channel, so they just re-write an already
    # masked block (idempotent, consecutive block revisits -> no hazards).
    slots = jnp.arange(P, dtype=jnp.int32)
    clamped = jnp.minimum(slots, jnp.maximum(selected_num - 1, 0))
    padded_idx = perm[clamped].astype(jnp.int32)

    # selected_num == 0 => nothing to mask; skip the kernel entirely so the
    # clamped padding cannot spuriously mask channel perm[0].
    return jax.lax.cond(
        selected_num > 0,
        lambda ops: _mask_selected_channels(ops[1], ops[0], mask_value),
        lambda ops: ops[1],
        (padded_idx, x),
    )


if __name__ == "__main__":
    N, C, H, W = 2, 4, 16, 16
    gaussian_mask_param = 3

    root = jax.random.PRNGKey(0)
    k_data, k_mask = jax.random.split(root)
    x = jax.random.normal(k_data, (N, C, H, W), dtype=jnp.float32)

    # --- 1) Direct kernel check with hand-picked (duplicated) channel indices,
    #        guaranteeing the write-only Pallas path runs (incl. block revisit).
    idx = jnp.array([1, 3, 3], dtype=jnp.int32)   # duplicate -> idempotent slot
    y_direct = jax.jit(lambda xx, ii: _mask_selected_channels(xx, ii, 0.0))(x, idx)
    y_direct = jax.block_until_ready(y_direct)
    ref_direct = x.at[:, jnp.array([1, 3])].set(0.0)
    assert jnp.allclose(y_direct, ref_direct), "direct channel-mask mismatch"

    # --- 2) End-to-end RNG path vs a pure-JAX reference over several keys
    #        (covers both the selected_num == 0 and > 0 branches).
    for i in range(4):
        k = jax.random.fold_in(k_mask, i)
        y = gaussian_index_masking(x, k, gaussian_mask_param, mask_value=0.0)
        y = jax.block_until_ready(y)

        k_num, k_perm = jax.random.split(k)
        sel_num = int(jax.random.randint(k_num, (), 0, gaussian_mask_param,
                                         dtype=jnp.int32))
        perm = jax.random.permutation(k_perm, C)
        ref = x.at[:, perm[:sel_num]].set(0.0) if sel_num > 0 else x
        assert jnp.allclose(y, ref), f"mismatch vs reference semantics (key {i})"

    # --- 3) Non-128-divisible spatial dims exercise the (H, W) fallback block.
    x_odd = jax.random.normal(jax.random.fold_in(k_data, 7), (N, C, 14, 14),
                              dtype=jnp.float32)
    y_odd = jax.jit(lambda xx, ii: _mask_selected_channels(xx, ii, 0.0))(x_odd, idx)
    y_odd = jax.block_until_ready(y_odd)
    ref_odd = x_odd.at[:, jnp.array([1, 3])].set(0.0)
    assert jnp.allclose(y_odd, ref_odd), "fallback-block channel-mask mismatch"

    # TODO(synk): torch's RNG streams (randint/randperm) cannot be bit-matched;
    # jax.random equivalents preserve the distributional semantics only.
    print("KERNEL_OK")
</pallas_src>

<mosaic_0001>
module attributes {stable_mosaic.version = 11 : i64} {
  func.func @_write_mask_kernel(%arg0: i32, %arg1: memref<3xi32, #tpu.memory_space<smem>>, %arg2: memref<2x4x2x128xf32, #tpu.memory_space<any>>, %arg3: memref<2x1x2x128xf32, #tpu.memory_space<vmem>>) attributes {dimension_semantics = [#tpu.dimension_semantics<arbitrary>], iteration_bounds = array<i64: 3>, scalar_prefetch = 1 : i64, scratch_operands = 0 : i64, tpu.core_type = #tpu.core_type<tc>, window_params = [{}, {transform_indices = @transform_1, window_bounds = array<i64: 2, 1, 2, 128>}]} {
    %cst = arith.constant 0.000000e+00 : f32
    %0 = vector.broadcast %cst : f32 to vector<2x1x2x128xf32>
    %c0 = arith.constant 0 : index
    %c0_0 = arith.constant 0 : index
    %c0_1 = arith.constant 0 : index
    %c0_2 = arith.constant 0 : index
    %1 = vector.load %arg3[%c0, %c0_0, %c0_1, %c0_2] : memref<2x1x2x128xf32, #tpu.memory_space<vmem>>, vector<2x1x2x128xf32>
    tpu.vector_store %arg3[%c0, %c0_0, %c0_1, %c0_2], %0 {strides = array<i32>} : memref<2x1x2x128xf32, #tpu.memory_space<vmem>>, vector<2x1x2x128xf32>,
    return
  }
  func.func @transform_1(%arg0: i32, %arg1: memref<3xi32, #tpu.memory_space<smem>>) -> (i32, i32, i32, i32) {
    %0 = arith.index_cast %arg0 : i32 to index
    %1 = memref.load %arg1[%0] : memref<3xi32, #tpu.memory_space<smem>>
    %c0_i32 = arith.constant 0 : i32
    %c0_i32_0 = arith.constant 0 : i32
    %c0_i32_1 = arith.constant 0 : i32
    %c0_i32_2 = arith.constant 0 : i32
    return %c0_i32, %1, %c0_i32_0, %c0_i32_1 : i32, i32, i32, i32
  }
}

</mosaic_0001>

<llo_original>
// kernel: _lambda_.1
$region0: #{_lambda_.1}
  #allocation0 [shape = 'u32[]', space=smem, size = 0x4, offset = 0x4, fixed_abs, tag = 'smem constant byte address 0x4 - core index']
  #allocation1 [shape = 'u32[144,128]{1,0:T(1,128)}', space=vmem, size = 0x12000, scoped, tag = 'internal scratch']
  #allocation2 [shape = 's32[1]{0}', space=sflag, size = 0x4, scoped, tag = 'scoped memory for _lambda_.1']
  #allocation3 [shape = 'u8[512]{0}', space=smem, size = 0x200, scoped, tag = 'prefetched SMEM operand 0']
  %s0 = inlined_call_operand.vmem [shape: s32[3], index: 0, kind: input, shape index: {}]
  %s1 = inlined_call_operand.vmem [shape: f32[2,4,2,128], index: 1, kind: input, shape index: {}, may-alias: {1,2}]
  %s2 = inlined_call_operand.vmem [shape: f32[2,4,2,128], index: 2, kind: output, shape index: {}, may-alias: {1,2}]
  %s3 = sld [smem:[#allocation0]]
  $region55: #{_lambda_.1} parent=0
    _
  %s5 = ssub.s32 1, %s3
  %s6 = scalar_select 0, %s5, %s3
  %s7 = sshll.u32 %s0, 4
  %s8 = int_to_ptr.vmem [resolvable:$true] %s7
  %10 = dma.vmem_to_smem %s8, 16, [#allocation3], [#allocation2]
  %11 = dma.done [#allocation2], 16
  %12 = sfence
  $region1: #{_lambda_.1} parent=0
    #allocation4 [shape = 'u8[4096]{0}', space=vmem, size = 0x1000, scoped, tag = 'output window, operand 0']
    loop: start=0, step=1, limit=4
    $region2: #{_lambda_.1} parent=1 // loop_pre_header
      _
    $region3: #{_lambda_.1} parent=1 // loop_header
      %s14 = sphi 0, %s18
      %p15 = scmp.ge.s32.totalorder %s14, 4
      %s25 = sphi 0, %s27
      %s28 = sphi 0, %s25
      %s38 = sphi 0, %s28
    $region4: #{_lambda_.1} parent=1 // loop_header_branch
      %17 = sbr.rel (%p15) target = $region8
    $region5: #{_lambda_.1} parent=1 // loop_body
      %s19 = ssub.s32 %s14, 1
      %s20 = sadd.s32 %s14, 1
      %s21 = sld [smem:[#allocation3 + %s14]]
      %s22 = sld [smem:[#allocation3 + %s20]]
      %s23 = ssub.s32 %s21, %s22
      %p24 = scmp.eq.s32.totalorder %s23, 0
      %s26 = sadd.s32 %s25, 1
      %s27 = scalar_select %p24, %s25, %s26
      %p29 = pneg %p24
      %p30 = scmp.eq.s32.totalorder %s14, 2
      %p31 = por %p29, %p30
      %p32 = scmp.ne.s32.totalorder %s25, %s28
      %p33 = scmp.eq.s32.totalorder %s14, 0
      %p34 = por %p32, %p33
      %p35 = scmp.ne.s32.totalorder %s25, %s28
      %p36 = scmp.eq.s32.totalorder %s19, 2
      %p37 = por %p35, %p36
      %p39 = scmp.ne.s32.totalorder %s28, %s38
      %p40 = scmp.eq.s32.totalorder %s19, 0
      %p41 = por %p39, %p40
      %p42 = scmp.lt.s32.totalorder %s14, 3
      // Predicated region
      $region9: #{_lambda_.1} parent=5 // pred_check
        %p43 = pneg %p42
      $region10: #{_lambda_.1} parent=5 // pred_check_branch
        %45 = sbr.rel (%p43) target = $region12
      $region11: #{_lambda_.1} parent=5 // pred_region
        %p46 = pneg %p34
        %p47 = pneg %p31
        %s48 = sand.u32 %s25, 1
        %s49 = sand.u32 %s25, 1
        %s50 = smul.addr %s49, 4
        %s51 = scalar_lea.vmem [#allocation4], %s50
        %s52 = sld [smem:[#allocation3 + %s14]]
        %53 = vst [vmem:[%s51] sm:$0x3] 0.0
        %54 = vst [vmem:[%s51 + $0x2] sm:$0x3] 0.0
        %s55 = sand.u32 %s25, 1
        %s56 = sand.u32 %s25, 1
        %s57 = smul.addr %s56, 4
        %s58 = scalar_lea.vmem [#allocation4], %s57
        // Predicated region
        $region13: #{_lambda_.1} parent=11 // pred_check
          %p59 = pneg %p31
        $region14: #{_lambda_.1} parent=11 // pred_check_branch
          %61 = sbr.rel (%p59) target = $region16
        $region15: #{_lambda_.1} parent=11 // pred_region
          %s62 = sld [smem:[#allocation3 + %s14]]
          %s63 = smul.addr %s62, 2
          %s64 = scalar_lea.vmem %s2, %s63
          // Predicated region
          $region17: #{_lambda_.1} parent=15 // pred_check
            _
          $region18: #{_lambda_.1} parent=15 // pred_check_branch
            %66 = sbr.rel (0) target = $region20
          $region19: #{_lambda_.1} parent=15 // pred_region
            // Predicated region
            $region21: #{_lambda_.1} parent=19 // pred_check
              _
            $region22: #{_lambda_.1} parent=19 // pred_check_branch
              %68 = sbr.rel target = $region24
            $region23: #{_lambda_.1} parent=19 // pred_region
              // Predicated region
              $region36: #{_lambda_.1} parent=23 // pred_check
                _
              $region37: #{_lambda_.1} parent=23 // pred_check_branch
                %85 = sbr.rel (0) target = $region39
              $region38: #{_lambda_.1} parent=23 // pred_region
                loop: start=0, step=1, limit=1
                $region40: #{_lambda_.1} parent=38 // loop_pre_header
                  _
                $region41: #{_lambda_.1} parent=38 // loop_header
                  %s88 = sphi 0, %s92
                  %p89 = scmp.ge.s32.totalorder %s88, 1
                  %s93 = sphi %s58, %s58
                  %s94 = sphi %s64, %s64
                $region42: #{_lambda_.1} parent=38 // loop_header_branch
                  %91 = sbr.rel (%p89) target = $region46
                $region43: #{_lambda_.1} parent=38 // loop_body
                  %v95 = vld [vmem:[%s93] sm:$0x3]
                  %96 = vst [vmem:[%s94] sm:$0x3] %v95
                  %v97 = vld [vmem:[%s93 + $0x2] sm:$0x3]
                  %98 = vst [vmem:[%s94 + $0x8] sm:$0x3] %v97
                $region44: #{_lambda_.1} parent=38 // loop_footer
                  %s92 = sadd.s32 1, %s88
                $region45: #{_lambda_.1} parent=38 // loop_footer_branch
                  %87 = sbr.rel target = $region41
                $region46: #{_lambda_.1} parent=38 // loop_exit
                  _
              $region39: #{_lambda_.1} parent=23 // pred_fallthru
                _
            $region24: #{_lambda_.1} parent=19 // pred_fallthru
              _
            // Predicated region
            $region25: #{_lambda_.1} parent=19 // pred_check
              _
            $region26: #{_lambda_.1} parent=19 // pred_check_branch
              %70 = sbr.rel (0) target = $region28
            $region27: #{_lambda_.1} parent=19 // pred_region
              loop: start=0, step=1, limit=1
              $region29: #{_lambda_.1} parent=27 // loop_pre_header
                _
              $region30: #{_lambda_.1} parent=27 // loop_header
                %s73 = sphi 0, %s77
                %p74 = scmp.ge.s32.totalorder %s73, 1
                %s78 = sphi %s58, %s58
                %s79 = sphi %s64, %s64
              $region31: #{_lambda_.1} parent=27 // loop_header_branch
                %76 = sbr.rel (%p74) target = $region35
              $region32: #{_lambda_.1} parent=27 // loop_body
                %v80 = vld [vmem:[%s78] sm:$0x3]
                %81 = vst [vmem:[%s79] sm:$0x3] %v80
                %v82 = vld [vmem:[%s78 + $0x2] sm:$0x3]
                %83 = vst [vmem:[%s79 + $0x8] sm:$0x3] %v82
              $region33: #{_lambda_.1} parent=27 // loop_footer
                %s77 = sadd.s32 1, %s73
              $region34: #{_lambda_.1} parent=27 // loop_footer_branch
                %72 = sbr.rel target = $region30
              $region35: #{_lambda_.1} parent=27 // loop_exit
                _
            $region28: #{_lambda_.1} parent=19 // pred_fallthru
              _
          $region20: #{_lambda_.1} parent=15 // pred_fallthru
            _
          %99 = vnop
        $region16: #{_lambda_.1} parent=11 // pred_fallthru
          _
      $region12: #{_lambda_.1} parent=5 // pred_fallthru
        _
      %p100 = scmp.le.s32.totalorder 1, %s14
      // Predicated region
      $region47: #{_lambda_.1} parent=5 // pred_check
        %p101 = pneg %p100
      $region48: #{_lambda_.1} parent=5 // pred_check_branch
        %103 = sbr.rel (%p101) target = $region50
      $region49: #{_lambda_.1} parent=5 // pred_region
        %s104 = ssub.s32 %s14, 1
        // Predicated region
        $region51: #{_lambda_.1} parent=49 // pred_check
          %p105 = pneg %p37
        $region52: #{_lambda_.1} parent=49 // pred_check_branch
          %107 = sbr.rel (%p105) target = $region54
        $region53: #{_lambda_.1} parent=49 // pred_region
          %s108 = sand.u32 %s28, 1
          %s109 = sand.u32 %s28, 1
          %s110 = smul.addr %s109, 4
          %s111 = scalar_lea.vmem [#allocation4], %s110
        $region54: #{_lambda_.1} parent=49 // pred_fallthru
          _
      $region50: #{_lambda_.1} parent=5 // pred_fallthru
        _
    $region6: #{_lambda_.1} parent=1 // loop_footer
      %s18 = sadd.s32 1, %s14
    $region7: #{_lambda_.1} parent=1 // loop_footer_branch
      %13 = sbr.rel target = $region3
    $region8: #{_lambda_.1} parent=1 // loop_exit
      _

</llo_original>
